<compile_context>
chip_gen: v7x
topology: tpu7x:2x2x1
jax: 0.10.0
libtpu: 0.0.40
codegen_flags: <defaults>
</compile_context>

<pallas_src>
import jax
import jax.numpy as jnp
from jax.experimental import pallas as pl
from jax.experimental.pallas import tpu as pltpu

LANES = 128
ROW_TILE = 2048   # max rows per grid step (f32: 1 MiB/input/buffer -> 4 MiB pipelined)
NSPLIT = 2        # row-axis split for megacore (v7x); harmless on 1-TC chips


def _bce_sum_kernel(g_ref, t_ref, out_ref):
    """Accumulate the per-tile BCE sum into the resident (8,128) f32 output."""
    # Zero the accumulator block at the start of each core's sweep.
    @pl.when(pl.program_id(1) == 0)
    def _():
        out_ref[...] = jnp.zeros_like(out_ref)

    x = g_ref[...].astype(jnp.float32)
    y = t_ref[...].astype(jnp.float32)

    # PyTorch BCELoss clamps each log term at -100.
    # NOTE: this clamp is also what makes zero-padded elements (x=0, y=0)
    # contribute exactly 0 (0*(-100) + 1*log(1) == 0) -- do not remove it.
    log_x = jnp.maximum(jnp.log(x), -100.0)
    log_1mx = jnp.maximum(jnp.log(1.0 - x), -100.0)

    # -(y*log_x + (1-y)*log_1mx), rewritten with one fewer multiply (VPU win
    # on v5e/v6e which have no f32 FMA; algebraically identical).
    loss = -(log_1mx + y * (log_x - log_1mx))

    rows = loss.shape[0]
    # Fold the tile into one (8,128) vreg stack: pure VPU adds, no XLU work.
    out_ref[...] += loss.reshape(rows // 8, 8, LANES).sum(axis=0)


def _pack_to_slab(x, rows):
    """Flatten x and zero-pad into a (rows, LANES) slab in its native dtype."""
    flat = x.reshape(-1)
    pad = rows * LANES - flat.shape[0]
    if pad:
        flat = jnp.pad(flat, (0, pad))
    return flat.reshape(rows, LANES)


def _round_up(a, b):
    return ((a + b - 1) // b) * b


@jax.jit
def loss_di(di_g, di_conf):
    """BCE loss with mean reduction, matching nn.BCELoss()(di_g, di_conf)."""
    assert di_g.shape == di_conf.shape
    n_elems = 1
    for d in di_g.shape:
        n_elems *= d

    # Sublane granularity for the narrowest input dtype (packed layouts).
    itemsize = min(jnp.dtype(di_g.dtype).itemsize,
                   jnp.dtype(di_conf.dtype).itemsize)
    sub = max(8, 32 // max(1, itemsize))

    # Rows needed to hold the data, rounded up to the packed sublane tiling.
    rows_needed = max(sub, _round_up(pl.cdiv(n_elems, LANES), sub))

    if rows_needed <= ROW_TILE:
        # Small input: one exact-size tile on one core.
        nsplit, steps, row_block = 1, 1, rows_needed
    else:
        # Large input: split rows across cores, then across pipeline steps.
        # row_block is sized so slab padding is at most a few rows.
        nsplit = NSPLIT
        steps = pl.cdiv(rows_needed, nsplit * ROW_TILE)
        row_block = _round_up(pl.cdiv(rows_needed, nsplit * steps), sub)
    rows = nsplit * steps * row_block

    g_slab = _pack_to_slab(di_g, rows)
    t_slab = _pack_to_slab(di_conf, rows)

    # Core i handles contiguous row-blocks [i*steps, (i+1)*steps).
    in_spec = pl.BlockSpec((row_block, LANES),
                           lambda i, j, _s=steps: (i * _s + j, 0))

    partial = pl.pallas_call(
        _bce_sum_kernel,
        out_shape=jax.ShapeDtypeStruct((nsplit * 8, LANES), jnp.float32),
        grid_spec=pltpu.PrefetchScalarGridSpec(
            num_scalar_prefetch=0,
            grid=(nsplit, steps),
            in_specs=[in_spec, in_spec],
            out_specs=pl.BlockSpec((8, LANES), lambda i, j: (i, 0)),
        ),
        compiler_params=pltpu.CompilerParams(
            dimension_semantics=("parallel", "arbitrary"),
            vmem_limit_bytes=32 * 1024 * 1024),
    )(g_slab, t_slab)

    # Final tiny reduction + mean: trivial XLA glue in the wrapper.
    return jnp.sum(partial) / jnp.float32(n_elems)


def _ref_bce(x, y):
    """Plain-JAX reference with PyTorch's -100 clamp."""
    x = x.astype(jnp.float32)
    y = y.astype(jnp.float32)
    log_x = jnp.maximum(jnp.log(x), -100.0)
    log_1mx = jnp.maximum(jnp.log(1.0 - x), -100.0)
    return jnp.mean(-(y * log_x + (1.0 - y) * log_1mx))


if __name__ == "__main__":
    key = jax.random.PRNGKey(0)
    k1, k2, k3, k4 = jax.random.split(key, 4)

    # Small discriminator output map (NCHW); predictions in (0,1), labels 0/1.
    shape = (2, 4, 16, 16)
    di_g = jax.nn.sigmoid(jax.random.normal(k1, shape, dtype=jnp.float32))
    di_conf = (jax.random.uniform(k2, shape) > 0.5).astype(jnp.float32)

    out = jax.block_until_ready(loss_di(di_g, di_conf))
    ref = _ref_bce(di_g, di_conf)
    assert jnp.allclose(out, ref, rtol=1e-5, atol=1e-6), (out, ref)

    # Also exercise the large multi-tile / megacore-split path with bf16 inputs
    # (native-dtype slabs, f32 accumulation inside the kernel).
    shape2 = (2, 4, 256, 256)
    di_g2 = jax.nn.sigmoid(jax.random.normal(k3, shape2)).astype(jnp.bfloat16)
    di_conf2 = (jax.random.uniform(k4, shape2) > 0.5).astype(jnp.bfloat16)
    out2 = jax.block_until_ready(loss_di(di_g2, di_conf2))
    ref2 = _ref_bce(di_g2, di_conf2)
    assert jnp.allclose(out2, ref2, rtol=1e-4, atol=1e-5), (out2, ref2)

    print("KERNEL_OK")
</pallas_src>

<mosaic_0001>
module attributes {stable_mosaic.version = 11 : i64} {
  func.func @_bce_sum_kernel(%arg0: i32, %arg1: i32, %arg2: memref<16x128xf32, #tpu.memory_space<vmem>>, %arg3: memref<16x128xf32, #tpu.memory_space<vmem>>, %arg4: memref<8x128xf32, #tpu.memory_space<vmem>>) attributes {dimension_semantics = [#tpu.dimension_semantics<parallel>, #tpu.dimension_semantics<arbitrary>], iteration_bounds = array<i64: 1, 1>, scalar_prefetch = 0 : i64, scratch_operands = 0 : i64, tpu.core_type = #tpu.core_type<tc>, window_params = [{transform_indices = @transform_0, window_bounds = array<i64: 16, 128>}, {transform_indices = @transform_1, window_bounds = array<i64: 16, 128>}, {transform_indices = @transform_2, window_bounds = array<i64: 8, 128>}]} {
    %c0_i32 = arith.constant 0 : i32
    %0 = arith.cmpi eq, %arg1, %c0_i32 : i32
    %1 = arith.extui %0 : i1 to i32
    %c0_i32_0 = arith.constant 0 : i32
    %2 = arith.cmpi ne, %1, %c0_i32_0 : i32
    scf.if %2 {
      %cst_12 = arith.constant 0.000000e+00 : f32
      %23 = vector.broadcast %cst_12 : f32 to vector<8x128xf32>
      %c0_13 = arith.constant 0 : index
      %c0_14 = arith.constant 0 : index
      %24 = vector.load %arg4[%c0_13, %c0_14] : memref<8x128xf32, #tpu.memory_space<vmem>>, vector<8x128xf32>
      tpu.vector_store %arg4[%c0_13, %c0_14], %23 {strides = array<i32>} : memref<8x128xf32, #tpu.memory_space<vmem>>, vector<8x128xf32>,
    } else {
    }
    %c0 = arith.constant 0 : index
    %c0_1 = arith.constant 0 : index
    %3 = vector.load %arg2[%c0, %c0_1] : memref<16x128xf32, #tpu.memory_space<vmem>>, vector<16x128xf32>
    %c0_2 = arith.constant 0 : index
    %c0_3 = arith.constant 0 : index
    %4 = vector.load %arg3[%c0_2, %c0_3] : memref<16x128xf32, #tpu.memory_space<vmem>>, vector<16x128xf32>
    %5 = math.log %3 : vector<16x128xf32>
    %cst = arith.constant -1.000000e+02 : f32
    %6 = vector.broadcast %cst : f32 to vector<16x128xf32>
    %7 = arith.maximumf %5, %6 : vector<16x128xf32>
    %cst_4 = arith.constant 1.000000e+00 : f32
    %8 = vector.broadcast %cst_4 : f32 to vector<16x128xf32>
    %9 = arith.subf %8, %3 : vector<16x128xf32>
    %10 = math.log %9 : vector<16x128xf32>
    %cst_5 = arith.constant -1.000000e+02 : f32
    %11 = vector.broadcast %cst_5 : f32 to vector<16x128xf32>
    %12 = arith.maximumf %10, %11 : vector<16x128xf32>
    %13 = arith.subf %7, %12 : vector<16x128xf32>
    %14 = arith.mulf %4, %13 : vector<16x128xf32>
    %15 = arith.addf %12, %14 : vector<16x128xf32>
    %cst_6 = arith.constant 0.000000e+00 : f32
    %16 = vector.broadcast %cst_6 : f32 to vector<16x128xf32>
    %17 = arith.subf %16, %15 : vector<16x128xf32>
    %c0_7 = arith.constant 0 : index
    %c0_8 = arith.constant 0 : index
    %18 = vector.load %arg4[%c0_7, %c0_8] : memref<8x128xf32, #tpu.memory_space<vmem>>, vector<8x128xf32>
    %19 = vector.shape_cast %17 : vector<16x128xf32> to vector<2x8x128xf32>
    %cst_9 = arith.constant dense<0.000000e+00> : vector<8x128xf32>
    %20 = vector.multi_reduction <add>, %19, %cst_9 [0] : vector<2x8x128xf32> to vector<8x128xf32>
    %21 = arith.addf %18, %20 : vector<8x128xf32>
    %c0_10 = arith.constant 0 : index
    %c0_11 = arith.constant 0 : index
    %22 = vector.load %arg4[%c0_10, %c0_11] : memref<8x128xf32, #tpu.memory_space<vmem>>, vector<8x128xf32>
    tpu.vector_store %arg4[%c0_10, %c0_11], %21 {strides = array<i32>} : memref<8x128xf32, #tpu.memory_space<vmem>>, vector<8x128xf32>,
    return
  }
  func.func @transform_0(%arg0: i32, %arg1: i32) -> (i32, i32) {
    %c1_i32 = arith.constant 1 : i32
    %0 = arith.muli %arg0, %c1_i32 : i32
    %1 = arith.addi %0, %arg1 : i32
    %c0_i32 = arith.constant 0 : i32
    %c0_i32_0 = arith.constant 0 : i32
    return %1, %c0_i32 : i32, i32
  }
  func.func @transform_1(%arg0: i32, %arg1: i32) -> (i32, i32) {
    %c1_i32 = arith.constant 1 : i32
    %0 = arith.muli %arg0, %c1_i32 : i32
    %1 = arith.addi %0, %arg1 : i32
    %c0_i32 = arith.constant 0 : i32
    %c0_i32_0 = arith.constant 0 : i32
    return %1, %c0_i32 : i32, i32
  }
  func.func @transform_2(%arg0: i32, %arg1: i32) -> (i32, i32) {
    %c0_i32 = arith.constant 0 : i32
    %c0_i32_0 = arith.constant 0 : i32
    return %arg0, %c0_i32 : i32, i32
  }
}

</mosaic_0001>

<llo_original>
// kernel: loss_di.1
$region0: #{loss_di.1}
  #allocation0 [shape = 'u32[]', space=smem, size = 0x4, offset = 0x4, fixed_abs, tag = 'smem constant byte address 0x4 - core index']
  #allocation1 [shape = 'u32[144,128]{1,0:T(1,128)}', space=vmem, size = 0x12000, scoped, tag = 'internal scratch']
  %s0 = inlined_call_operand.vmem [shape: f32[16,128], index: 0, kind: input, shape index: {}]
  %s1 = inlined_call_operand.vmem [shape: f32[16,128], index: 1, kind: input, shape index: {}]
  %s2 = inlined_call_operand.vmem [shape: f32[8,128], index: 2, kind: output, shape index: {}]
  %s3 = sld [smem:[#allocation0]]
  $region22: #{loss_di.1} parent=0
    _
  %s5 = ssub.s32 1, %s3
  %s6 = scalar_select 0, %s5, %s3
  // Predicated region
  $region2: #{loss_di.1} parent=0 // pred_check
    _
  $region3: #{loss_di.1} parent=0 // pred_check_branch
    %8 = sbr.rel (0) target = $region5
  $region4: #{loss_di.1} parent=0 // pred_region
    %s9 = sadd.s32 0, 0
    %s10 = smul.u32 2, %s9
    %p11 = scmp.lt.s32.totalorder %s10, 1
    %s12 = scalar_select %p11, %s10, 1
    %s13 = smul.addr %s12, 8
    %s14 = scalar_lea.vmem %s0, %s13
    %s15 = sadd.s32 0, 0
    %s16 = smul.u32 2, %s15
  $region5: #{loss_di.1} parent=0 // pred_fallthru
    _
  // Predicated region
  $region6: #{loss_di.1} parent=0 // pred_check
    _
  $region7: #{loss_di.1} parent=0 // pred_check_branch
    %18 = sbr.rel (0) target = $region9
  $region8: #{loss_di.1} parent=0 // pred_region
    %s19 = sadd.s32 0, 0
    %s20 = smul.u32 2, %s19
    %p21 = scmp.lt.s32.totalorder %s20, 1
    %s22 = scalar_select %p21, %s20, 1
    %s23 = smul.addr %s22, 8
    %s24 = scalar_lea.vmem %s1, %s23
    %s25 = sadd.s32 0, 0
    %s26 = smul.u32 2, %s25
  $region9: #{loss_di.1} parent=0 // pred_fallthru
    _
  %s27 = sadd.s32 0, 0
  %s28 = smul.u32 2, %s27
  %p29 = scmp.lt.s32.totalorder %s28, 1
  %s30 = scalar_select %p29, %s28, 1
  %s31 = smul.addr %s30, 8
  %s32 = scalar_lea.vmem %s0, %s31
  %s33 = sadd.s32 0, 0
  %s34 = smul.u32 2, %s33
  %p35 = scmp.lt.s32.totalorder %s34, 1
  %s36 = scalar_select %p35, %s34, 1
  %s37 = smul.addr %s36, 8
  %s38 = scalar_lea.vmem %s1, %s37
  %s39 = sadd.s32 0, 0
  %s40 = smul.u32 2, %s39
  %p41 = scmp.lt.s32.totalorder %s40, 1
  %s42 = scalar_select %p41, %s40, 1
  %s43 = smul.addr %s42, 8
  %s44 = scalar_lea.vmem %s0, %s43
  %s45 = sadd.s32 0, 0
  %s46 = smul.u32 2, %s45
  %s47 = sadd.s32 0, 0
  %s48 = smul.u32 2, %s47
  %p49 = scmp.lt.s32.totalorder %s48, 1
  %s50 = scalar_select %p49, %s48, 1
  %s51 = smul.addr %s50, 8
  %s52 = scalar_lea.vmem %s1, %s51
  %s53 = sadd.s32 0, 0
  %s54 = smul.u32 2, %s53
  %p55 = scmp.eq.s32.totalorder 0, 0
  // Predicated region
  $region10: #{loss_di.1} parent=0 // pred_check
    %p56 = pneg %p55
  $region11: #{loss_di.1} parent=0 // pred_check_branch
    %58 = sbr.rel (%p56) target = $region13
  $region12: #{loss_di.1} parent=0 // pred_region
    %59 = vst [vmem:[%s2] sm:$0xff] 0.0
  $region13: #{loss_di.1} parent=0 // pred_fallthru
    _
  %v60 = vld [vmem:[%s44] sm:$0xff]
  %v61 = vld [vmem:[%s44 + $0x8] sm:$0xff]
  %v62 = vld [vmem:[%s52] sm:$0xff]
  %v63 = vld [vmem:[%s52 + $0x8] sm:$0xff]
  %v64 = vlog2.pop %v60
  %v65 = vmul.f32 %v64, 0.6931472
  %v66 = vlog2.pop %v61
  %v67 = vmul.f32 %v66, 0.6931472
  %v68 = vmax.f32 %v65, -100.0
  %v69 = vmax.f32 %v67, -100.0
  %v70 = vsub.f32 1.0, %v60
  %v71 = vsub.f32 1.0, %v61
  %v72 = vlog2.pop %v70
  %v73 = vmul.f32 %v72, 0.6931472
  %v74 = vlog2.pop %v71
  %v75 = vmul.f32 %v74, 0.6931472
  %v76 = vmax.f32 %v73, -100.0
  %v77 = vmax.f32 %v75, -100.0
  %v78 = vsub.f32 %v68, %v76
  %v79 = vsub.f32 %v69, %v77
  %v80 = vmul.f32 %v62, %v78
  %v81 = vmul.f32 %v63, %v79
  %v82 = vadd.f32 %v76, %v80
  %v83 = vadd.f32 %v77, %v81
  %v84 = vsub.f32 0.0, %v82
  %v85 = vsub.f32 0.0, %v83
  %v86 = vld [vmem:[%s2] sm:$0xff]
  %v87 = vadd.f32 %v84, %v85
  %v88 = vadd.f32 %v86, %v87
  %89 = vst [vmem:[%s2] sm:$0xff] %v88
  // Predicated region
  $region14: #{loss_di.1} parent=0 // pred_check
    _
  $region15: #{loss_di.1} parent=0 // pred_check_branch
    %91 = sbr.rel (0) target = $region17
  $region16: #{loss_di.1} parent=0 // pred_region
    _
  $region17: #{loss_di.1} parent=0 // pred_fallthru
    _
  // Predicated region
  $region18: #{loss_di.1} parent=0 // pred_check
    _
  $region19: #{loss_di.1} parent=0 // pred_check_branch
    %93 = sbr.rel (0) target = $region21
  $region20: #{loss_di.1} parent=0 // pred_region
    _
  $region21: #{loss_di.1} parent=0 // pred_fallthru
    _

</llo_original>
